<compile_context>
chip_gen: v7x
topology: tpu7x:2x2x1
jax: 0.10.0
libtpu: 0.0.40
codegen_flags: <defaults>
</compile_context>

<pallas_src>
import jax
import jax.numpy as jnp
from jax.experimental import pallas as pl
from jax.experimental.pallas import tpu as pltpu


def _round_up(n, m):
    return ((n + m - 1) // m) * m


def _cdiv(a, b):
    return -(-a // b)


# --------------------------------- kernel ---------------------------------

def _vae_kernel(x_ref, w1_ref, b1_ref, w2_ref, b2_ref,
                w3a_ref, w3b_ref, b3_ref, w4_ref, b4_ref, eps_ref,
                xrec_ref, lat_ref):
    f32 = jnp.float32
    bf16 = jnp.bfloat16

    # ---- encoder: Linear -> ReLU (bf16) -> fused packed [mu | logvar] head ----
    h = jnp.maximum(
        (jnp.dot(x_ref[...], w1_ref[...], preferred_element_type=f32)
         + b1_ref[...]).astype(bf16), 0)
    lat = jnp.dot(h, w2_ref[...], preferred_element_type=f32) + b2_ref[...]
    # lat layout (packed): lanes [:L] = mu, [L:2L] = logvar, rest zero.

    # ---- reparameterize without cross-lane moves ----
    # eps is nonzero only on the logvar lanes, so:
    #   noise = eps * exp(0.5 * logvar)     (on the logvar lanes, zero elsewhere)
    #   z @ w3 = mu @ w3 + noise @ w3   ->   lat @ w3a + noise @ w3b
    noise = eps_ref[...].astype(f32) * jnp.exp(0.5 * lat)

    # ---- decoder: Linear -> ReLU (bf16) -> Linear ----
    h2 = jnp.maximum(
        (jnp.dot(lat.astype(bf16), w3a_ref[...], preferred_element_type=f32)
         + jnp.dot(noise.astype(bf16), w3b_ref[...], preferred_element_type=f32)
         + b3_ref[...]).astype(bf16), 0)
    xrec = jnp.dot(h2, w4_ref[...], preferred_element_type=f32) + b4_ref[...]

    xrec_ref[...] = xrec.astype(xrec_ref.dtype)   # bf16, lane-dense store
    lat_ref[...] = lat                            # f32 packed [mu | logvar]


# ------------------------------ param staging ------------------------------

def prepare_params(params, *, input_dim, latent_dim, hidden_dim):
    """One-time padding + bf16 cast of the weights (hoisted out of the forward)."""
    D, L, H = input_dim, latent_dim, hidden_dim
    Dp = _round_up(D, 128)
    Hp = _round_up(H, 128)
    Lt = _round_up(2 * L, 128)          # packed mu||logvar lane width
    f32, bf16 = jnp.float32, jnp.bfloat16

    def pad2(w, r, c, rp, cp):
        return jnp.zeros((rp, cp), f32).at[:r, :c].set(w)

    w3 = params["w3"]                   # [L, H]
    prep = {
        "w1": pad2(params["w1"], D, H, Dp, Hp).astype(bf16),
        "b1": pad2(params["b1"], 1, H, 1, Hp),
        "w2": pad2(params["w2"], H, 2 * L, Hp, Lt).astype(bf16),   # [mu | logvar]
        "b2": pad2(params["b2"], 1, 2 * L, 1, Lt),
        # decoder first layer, split:  z @ w3 = mu @ w3 + noise @ w3
        #   w3a rows [:L]   pick the mu lanes of `lat`
        #   w3b rows [L:2L] pick the noise lanes (eps * std)
        "w3a": jnp.zeros((Lt, Hp), f32).at[:L, :H].set(w3).astype(bf16),
        "w3b": jnp.zeros((Lt, Hp), f32).at[L:2 * L, :H].set(w3).astype(bf16),
        "b3": pad2(params["b3"], 1, H, 1, Hp),
        "w4": pad2(params["w4"], H, D, Hp, Dp).astype(bf16),
        "b4": pad2(params["b4"], 1, D, 1, Dp),
    }
    dims = dict(D=D, L=L, H=H, Dp=Dp, Hp=Hp, Lt=Lt)
    return prep, dims


def _pick_batch_tiling(B, Dp, Hp, Lt, batch_tile, vmem_budget_bytes=24 << 20):
    """Choose (tile_rows, padded_batch).

    - caps the tile so resident weights + double-buffered streamed tiles +
      f32/bf16 temporaries fit a conservative scoped-VMEM budget (v7x-safe),
    - targets >= 2 grid steps when the batch allows it (v7x megacore + pipeline
      overlap on all generations),
    - keeps tiles a multiple of 16 rows (bf16 sublane packing) and avoids
      near-2x batch padding.
    """
    weight_bytes = 2 * (Dp * Hp + Hp * Lt + 2 * Lt * Hp + Hp * Dp) \
        + 4 * (2 * Hp + Lt + Dp)
    # rough per-row VMEM: bf16 in/out streams (x, eps, xrec; 2 buffers each),
    # f32 latent stream (2 buffers), f32 lat/noise temporaries, bf16 h/h2.
    per_row = (2 * 2 * (Dp + Lt)            # x, eps tiles (bf16, double-buffered)
               + 2 * (2 * Dp + 4 * Lt)      # xrec (bf16) + latent (f32) tiles
               + 4 * 2 * Lt                 # lat, noise f32 temporaries
               + 2 * 2 * Hp + 4 * Dp)       # h, h2 (bf16), xrec f32 temp
    avail = max(vmem_budget_bytes - weight_bytes, 16 * per_row)
    cap = max(16, (avail // per_row) // 16 * 16)
    tile = min(batch_tile, cap)

    min_tiles = 2 if B >= 32 else 1
    n_tiles = max(min_tiles, _cdiv(B, tile))
    TB = min(tile, _round_up(_cdiv(B, n_tiles), 16))
    Bp = _round_up(B, TB)
    return TB, Bp


# --------------------------------- wrapper ---------------------------------

def vae_forward(x, prep, dims, eps, *, batch_tile=512):
    """Full VAE forward via one batch-tiled Pallas kernel.

    Returns (x_recon, mu, logvar), matching the PyTorch module's forward.
    """
    B, D = x.shape
    L, Dp, Hp, Lt = dims["L"], dims["Dp"], dims["Hp"], dims["Lt"]
    assert D == dims["D"] and eps.shape == (B, L)
    f32, bf16 = jnp.float32, jnp.bfloat16

    TB, Bp = _pick_batch_tiling(B, Dp, Hp, Lt, batch_tile)
    grid = (Bp // TB,)

    xp = jnp.zeros((Bp, Dp), bf16).at[:B, :D].set(x.astype(bf16))
    # eps occupies the logvar lanes [L:2L]; all other lanes stay zero.
    epsp = jnp.zeros((Bp, Lt), bf16).at[:B, L:2 * L].set(eps.astype(bf16))

    def stream(cols):
        # Batch-tiled streamed array (double-buffered by the pipeline).
        return pl.BlockSpec((TB, cols), lambda i: (i, 0))

    def resident(shape):
        # Constant index_map -> weight/bias stays VMEM-resident across steps.
        # TODO(synk): pipeline_mode=pl.Buffered(1) would single-buffer these
        # resident blocks and halve their VMEM footprint (useful on v7x).
        return pl.BlockSpec(shape, lambda i: (0, 0))

    xrec_p, lat_p = pl.pallas_call(
        _vae_kernel,
        out_shape=(
            jax.ShapeDtypeStruct((Bp, Dp), bf16),   # x_recon (bf16 writeback)
            jax.ShapeDtypeStruct((Bp, Lt), f32),    # packed [mu | logvar]
        ),
        grid_spec=pltpu.PrefetchScalarGridSpec(
            num_scalar_prefetch=0,
            grid=grid,
            in_specs=[
                stream(Dp),                                   # x tile
                resident((Dp, Hp)), resident((1, Hp)),        # w1, b1
                resident((Hp, Lt)), resident((1, Lt)),        # w2 (packed), b2
                resident((Lt, Hp)), resident((Lt, Hp)),       # w3a (mu), w3b (noise)
                resident((1, Hp)),                            # b3
                resident((Hp, Dp)), resident((1, Dp)),        # w4, b4
                stream(Lt),                                   # eps tile
            ],
            out_specs=(stream(Dp), stream(Lt)),
        ),
        compiler_params=pltpu.CompilerParams(
            dimension_semantics=("parallel",),
        ),
    )(xp, prep["w1"], prep["b1"], prep["w2"], prep["b2"],
      prep["w3a"], prep["w3b"], prep["b3"], prep["w4"], prep["b4"], epsp)

    x_recon = xrec_p[:B, :D].astype(f32)
    mu = lat_p[:B, :L]
    logvar = lat_p[:B, L:2 * L]
    return x_recon, mu, logvar


# ----------------------- param init (matches the module) -----------------------

def xavier_normal(key, fan_in, fan_out):
    std = jnp.sqrt(2.0 / (fan_in + fan_out))
    return std * jax.random.normal(key, (fan_in, fan_out), dtype=jnp.float32)


def linear_bias(key, fan_in, fan_out):
    # PyTorch nn.Linear default bias init: U(-1/sqrt(fan_in), 1/sqrt(fan_in)).
    bound = 1.0 / jnp.sqrt(jnp.float32(fan_in))
    return jax.random.uniform(key, (1, fan_out), dtype=jnp.float32,
                              minval=-bound, maxval=bound)


def init_params(key, input_dim, latent_dim, hidden_dim):
    ks = jax.random.split(key, 8)
    return {
        "w1": xavier_normal(ks[0], input_dim, hidden_dim),
        "b1": linear_bias(ks[1], input_dim, hidden_dim),
        "w2": xavier_normal(ks[2], hidden_dim, 2 * latent_dim),  # [mu | logvar]
        "b2": linear_bias(ks[3], hidden_dim, 2 * latent_dim),
        "w3": xavier_normal(ks[4], latent_dim, hidden_dim),
        "b3": linear_bias(ks[5], latent_dim, hidden_dim),
        "w4": xavier_normal(ks[6], hidden_dim, input_dim),
        "b4": linear_bias(ks[7], hidden_dim, input_dim),
    }


# --------------------------------- reference ---------------------------------

def reference_forward(x, params, eps, latent_dim):
    """Pure-JAX reference for the kernel's numeric contract.

    Matmuls use bf16 operands with f32 accumulation (the kernel's precision
    contract). The decoder's first layer is written as
        z @ w3 = mu @ w3 + (eps * std) @ w3,
    which is algebraically identical to the PyTorch module's z @ w3 and mirrors
    the kernel's bf16 rounding points exactly.
    """
    bf16, f32 = jnp.bfloat16, jnp.float32
    L = latent_dim

    def mm(a, b):
        return jnp.dot(a.astype(bf16), b.astype(bf16), preferred_element_type=f32)

    h = jnp.maximum(mm(x, params["w1"]) + params["b1"], 0.0)
    lat = mm(h, params["w2"]) + params["b2"]
    mu, logvar = lat[:, :L], lat[:, L:]
    noise = eps.astype(bf16).astype(f32) * jnp.exp(0.5 * logvar)
    h2 = jnp.maximum(mm(mu, params["w3"]) + mm(noise, params["w3"])
                     + params["b3"], 0.0)
    xr = mm(h2, params["w4"]) + params["b4"]
    return xr, mu, logvar


if __name__ == "__main__":
    # Small shapes consistent with the module: x is [batch, input_dim].
    batch, input_dim, latent_dim, hidden_dim = 8, 16, 4, 32

    key = jax.random.PRNGKey(0)
    k_params, k_x, k_eps = jax.random.split(key, 3)

    params = init_params(k_params, input_dim, latent_dim, hidden_dim)
    x = jax.random.normal(k_x, (batch, input_dim), dtype=jnp.float32)
    eps = jax.random.normal(k_eps, (batch, latent_dim), dtype=jnp.float32)

    # One-time weight staging (padding + bf16 cast), hoisted out of the forward.
    prep, dims = prepare_params(params, input_dim=input_dim,
                                latent_dim=latent_dim, hidden_dim=hidden_dim)

    x_recon, mu, logvar = vae_forward(x, prep, dims, eps)
    jax.block_until_ready((x_recon, mu, logvar))

    xr_ref, mu_ref, lv_ref = reference_forward(x, params, eps, latent_dim)

    assert x_recon.shape == (batch, input_dim)
    assert mu.shape == (batch, latent_dim) and logvar.shape == (batch, latent_dim)
    assert jnp.allclose(mu, mu_ref, atol=1e-3, rtol=1e-3)
    assert jnp.allclose(logvar, lv_ref, atol=1e-3, rtol=1e-3)
    # x_recon is stored in bf16 by the kernel -> allow bf16 rounding slack.
    assert jnp.allclose(x_recon, xr_ref, atol=5e-3, rtol=5e-3)

    print("KERNEL_OK")
</pallas_src>

<mosaic_0001>
module attributes {stable_mosaic.version = 11 : i64} {
  func.func @_vae_kernel(%arg0: i32, %arg1: memref<16x128xbf16, #tpu.memory_space<vmem>>, %arg2: memref<128x128xbf16, #tpu.memory_space<vmem>>, %arg3: memref<1x128xf32, #tpu.memory_space<vmem>>, %arg4: memref<128x128xbf16, #tpu.memory_space<vmem>>, %arg5: memref<1x128xf32, #tpu.memory_space<vmem>>, %arg6: memref<128x128xbf16, #tpu.memory_space<vmem>>, %arg7: memref<128x128xbf16, #tpu.memory_space<vmem>>, %arg8: memref<1x128xf32, #tpu.memory_space<vmem>>, %arg9: memref<128x128xbf16, #tpu.memory_space<vmem>>, %arg10: memref<1x128xf32, #tpu.memory_space<vmem>>, %arg11: memref<16x128xbf16, #tpu.memory_space<vmem>>, %arg12: memref<16x128xbf16, #tpu.memory_space<vmem>>, %arg13: memref<16x128xf32, #tpu.memory_space<vmem>>) attributes {dimension_semantics = [#tpu.dimension_semantics<parallel>], iteration_bounds = array<i64: 1>, scalar_prefetch = 0 : i64, scratch_operands = 0 : i64, tpu.core_type = #tpu.core_type<tc>, window_params = [{transform_indices = @transform_0, window_bounds = array<i64: 16, 128>}, {pipeline_mode = #tpu.pipeline_mode<synchronous>, transform_indices = @transform_1, window_bounds = array<i64: 128, 128>}, {pipeline_mode = #tpu.pipeline_mode<synchronous>, transform_indices = @transform_2, window_bounds = array<i64: 1, 128>}, {pipeline_mode = #tpu.pipeline_mode<synchronous>, transform_indices = @transform_3, window_bounds = array<i64: 128, 128>}, {pipeline_mode = #tpu.pipeline_mode<synchronous>, transform_indices = @transform_4, window_bounds = array<i64: 1, 128>}, {pipeline_mode = #tpu.pipeline_mode<synchronous>, transform_indices = @transform_5, window_bounds = array<i64: 128, 128>}, {pipeline_mode = #tpu.pipeline_mode<synchronous>, transform_indices = @transform_6, window_bounds = array<i64: 128, 128>}, {pipeline_mode = #tpu.pipeline_mode<synchronous>, transform_indices = @transform_7, window_bounds = array<i64: 1, 128>}, {pipeline_mode = #tpu.pipeline_mode<synchronous>, transform_indices = @transform_8, window_bounds = array<i64: 128, 128>}, {pipeline_mode = #tpu.pipeline_mode<synchronous>, transform_indices = @transform_9, window_bounds = array<i64: 1, 128>}, {transform_indices = @transform_10, window_bounds = array<i64: 16, 128>}, {transform_indices = @transform_11, window_bounds = array<i64: 16, 128>}, {transform_indices = @transform_12, window_bounds = array<i64: 16, 128>}]} {
    %c0 = arith.constant 0 : index
    %c0_0 = arith.constant 0 : index
    %0 = vector.load %arg1[%c0, %c0_0] : memref<16x128xbf16, #tpu.memory_space<vmem>>, vector<16x128xbf16>
    %c0_1 = arith.constant 0 : index
    %c0_2 = arith.constant 0 : index
    %1 = vector.load %arg2[%c0_1, %c0_2] : memref<128x128xbf16, #tpu.memory_space<vmem>>, vector<128x128xbf16>
    %cst = arith.constant dense<0.000000e+00> : vector<16x128xf32>
    %2 = tpu.matmul %0, %1, %cst {dimension_numbers = #tpu.dot_dimension_numbers<[1], [0], [0], [1], [0, 0, 1, 1], [], []>} : vector<16x128xbf16>, vector<128x128xbf16>, vector<16x128xf32> -> vector<16x128xf32>
    %c0_3 = arith.constant 0 : index
    %c0_4 = arith.constant 0 : index
    %3 = vector.load %arg3[%c0_3, %c0_4] : memref<1x128xf32, #tpu.memory_space<vmem>>, vector<1x128xf32>
    %4 = vector.broadcast %3 : vector<1x128xf32> to vector<16x128xf32>
    %5 = arith.addf %2, %4 : vector<16x128xf32>
    %6 = arith.truncf %5 : vector<16x128xf32> to vector<16x128xbf16>
    %cst_5 = arith.constant 0.000000e+00 : bf16
    %7 = vector.broadcast %cst_5 : bf16 to vector<16x128xbf16>
    %8 = arith.maximumf %6, %7 : vector<16x128xbf16>
    %c0_6 = arith.constant 0 : index
    %c0_7 = arith.constant 0 : index
    %9 = vector.load %arg4[%c0_6, %c0_7] : memref<128x128xbf16, #tpu.memory_space<vmem>>, vector<128x128xbf16>
    %cst_8 = arith.constant dense<0.000000e+00> : vector<16x128xf32>
    %10 = tpu.matmul %8, %9, %cst_8 {dimension_numbers = #tpu.dot_dimension_numbers<[1], [0], [0], [1], [0, 0, 1, 1], [], []>} : vector<16x128xbf16>, vector<128x128xbf16>, vector<16x128xf32> -> vector<16x128xf32>
    %c0_9 = arith.constant 0 : index
    %c0_10 = arith.constant 0 : index
    %11 = vector.load %arg5[%c0_9, %c0_10] : memref<1x128xf32, #tpu.memory_space<vmem>>, vector<1x128xf32>
    %12 = vector.broadcast %11 : vector<1x128xf32> to vector<16x128xf32>
    %13 = arith.addf %10, %12 : vector<16x128xf32>
    %c0_11 = arith.constant 0 : index
    %c0_12 = arith.constant 0 : index
    %14 = vector.load %arg11[%c0_11, %c0_12] : memref<16x128xbf16, #tpu.memory_space<vmem>>, vector<16x128xbf16>
    %15 = arith.extf %14 : vector<16x128xbf16> to vector<16x128xf32>
    %cst_13 = arith.constant 5.000000e-01 : f32
    %16 = vector.broadcast %cst_13 : f32 to vector<16x128xf32>
    %17 = arith.mulf %16, %13 : vector<16x128xf32>
    %18 = math.exp %17 : vector<16x128xf32>
    %19 = arith.mulf %15, %18 : vector<16x128xf32>
    %20 = arith.truncf %13 : vector<16x128xf32> to vector<16x128xbf16>
    %c0_14 = arith.constant 0 : index
    %c0_15 = arith.constant 0 : index
    %21 = vector.load %arg6[%c0_14, %c0_15] : memref<128x128xbf16, #tpu.memory_space<vmem>>, vector<128x128xbf16>
    %cst_16 = arith.constant dense<0.000000e+00> : vector<16x128xf32>
    %22 = tpu.matmul %20, %21, %cst_16 {dimension_numbers = #tpu.dot_dimension_numbers<[1], [0], [0], [1], [0, 0, 1, 1], [], []>} : vector<16x128xbf16>, vector<128x128xbf16>, vector<16x128xf32> -> vector<16x128xf32>
    %23 = arith.truncf %19 : vector<16x128xf32> to vector<16x128xbf16>
    %c0_17 = arith.constant 0 : index
    %c0_18 = arith.constant 0 : index
    %24 = vector.load %arg7[%c0_17, %c0_18] : memref<128x128xbf16, #tpu.memory_space<vmem>>, vector<128x128xbf16>
    %cst_19 = arith.constant dense<0.000000e+00> : vector<16x128xf32>
    %25 = tpu.matmul %23, %24, %cst_19 {dimension_numbers = #tpu.dot_dimension_numbers<[1], [0], [0], [1], [0, 0, 1, 1], [], []>} : vector<16x128xbf16>, vector<128x128xbf16>, vector<16x128xf32> -> vector<16x128xf32>
    %26 = arith.addf %22, %25 : vector<16x128xf32>
    %c0_20 = arith.constant 0 : index
    %c0_21 = arith.constant 0 : index
    %27 = vector.load %arg8[%c0_20, %c0_21] : memref<1x128xf32, #tpu.memory_space<vmem>>, vector<1x128xf32>
    %28 = vector.broadcast %27 : vector<1x128xf32> to vector<16x128xf32>
    %29 = arith.addf %26, %28 : vector<16x128xf32>
    %30 = arith.truncf %29 : vector<16x128xf32> to vector<16x128xbf16>
    %cst_22 = arith.constant 0.000000e+00 : bf16
    %31 = vector.broadcast %cst_22 : bf16 to vector<16x128xbf16>
    %32 = arith.maximumf %30, %31 : vector<16x128xbf16>
    %c0_23 = arith.constant 0 : index
    %c0_24 = arith.constant 0 : index
    %33 = vector.load %arg9[%c0_23, %c0_24] : memref<128x128xbf16, #tpu.memory_space<vmem>>, vector<128x128xbf16>
    %cst_25 = arith.constant dense<0.000000e+00> : vector<16x128xf32>
    %34 = tpu.matmul %32, %33, %cst_25 {dimension_numbers = #tpu.dot_dimension_numbers<[1], [0], [0], [1], [0, 0, 1, 1], [], []>} : vector<16x128xbf16>, vector<128x128xbf16>, vector<16x128xf32> -> vector<16x128xf32>
    %c0_26 = arith.constant 0 : index
    %c0_27 = arith.constant 0 : index
    %35 = vector.load %arg10[%c0_26, %c0_27] : memref<1x128xf32, #tpu.memory_space<vmem>>, vector<1x128xf32>
    %36 = vector.broadcast %35 : vector<1x128xf32> to vector<16x128xf32>
    %37 = arith.addf %34, %36 : vector<16x128xf32>
    %38 = arith.truncf %37 : vector<16x128xf32> to vector<16x128xbf16>
    %c0_28 = arith.constant 0 : index
    %c0_29 = arith.constant 0 : index
    %39 = vector.load %arg12[%c0_28, %c0_29] : memref<16x128xbf16, #tpu.memory_space<vmem>>, vector<16x128xbf16>
    tpu.vector_store %arg12[%c0_28, %c0_29], %38 {strides = array<i32>} : memref<16x128xbf16, #tpu.memory_space<vmem>>, vector<16x128xbf16>,
    %c0_30 = arith.constant 0 : index
    %c0_31 = arith.constant 0 : index
    %40 = vector.load %arg13[%c0_30, %c0_31] : memref<16x128xf32, #tpu.memory_space<vmem>>, vector<16x128xf32>
    tpu.vector_store %arg13[%c0_30, %c0_31], %13 {strides = array<i32>} : memref<16x128xf32, #tpu.memory_space<vmem>>, vector<16x128xf32>,
    return
  }
  func.func @transform_0(%arg0: i32) -> (i32, i32) {
    %c0_i32 = arith.constant 0 : i32
    %c0_i32_0 = arith.constant 0 : i32
    return %arg0, %c0_i32 : i32, i32
  }
  func.func @transform_1(%arg0: i32) -> (i32, i32) {
    %c0_i32 = arith.constant 0 : i32
    %c0_i32_0 = arith.constant 0 : i32
    %c0_i32_1 = arith.constant 0 : i32
    return %c0_i32, %c0_i32_0 : i32, i32
  }
  func.func @transform_2(%arg0: i32) -> (i32, i32) {
    %c0_i32 = arith.constant 0 : i32
    %c0_i32_0 = arith.constant 0 : i32
    %c0_i32_1 = arith.constant 0 : i32
    return %c0_i32, %c0_i32_0 : i32, i32
  }
  func.func @transform_3(%arg0: i32) -> (i32, i32) {
    %c0_i32 = arith.constant 0 : i32
    %c0_i32_0 = arith.constant 0 : i32
    %c0_i32_1 = arith.constant 0 : i32
    return %c0_i32, %c0_i32_0 : i32, i32
  }
  func.func @transform_4(%arg0: i32) -> (i32, i32) {
    %c0_i32 = arith.constant 0 : i32
    %c0_i32_0 = arith.constant 0 : i32
    %c0_i32_1 = arith.constant 0 : i32
    return %c0_i32, %c0_i32_0 : i32, i32
  }
  func.func @transform_5(%arg0: i32) -> (i32, i32) {
    %c0_i32 = arith.constant 0 : i32
    %c0_i32_0 = arith.constant 0 : i32
    %c0_i32_1 = arith.constant 0 : i32
    return %c0_i32, %c0_i32_0 : i32, i32
  }
  func.func @transform_6(%arg0: i32) -> (i32, i32) {
    %c0_i32 = arith.constant 0 : i32
    %c0_i32_0 = arith.constant 0 : i32
    %c0_i32_1 = arith.constant 0 : i32
    return %c0_i32, %c0_i32_0 : i32, i32
  }
  func.func @transform_7(%arg0: i32) -> (i32, i32) {
    %c0_i32 = arith.constant 0 : i32
    %c0_i32_0 = arith.constant 0 : i32
    %c0_i32_1 = arith.constant 0 : i32
    return %c0_i32, %c0_i32_0 : i32, i32
  }
  func.func @transform_8(%arg0: i32) -> (i32, i32) {
    %c0_i32 = arith.constant 0 : i32
    %c0_i32_0 = arith.constant 0 : i32
    %c0_i32_1 = arith.constant 0 : i32
    return %c0_i32, %c0_i32_0 : i32, i32
  }
  func.func @transform_9(%arg0: i32) -> (i32, i32) {
    %c0_i32 = arith.constant 0 : i32
    %c0_i32_0 = arith.constant 0 : i32
    %c0_i32_1 = arith.constant 0 : i32
    return %c0_i32, %c0_i32_0 : i32, i32
  }
  func.func @transform_10(%arg0: i32) -> (i32, i32) {
    %c0_i32 = arith.constant 0 : i32
    %c0_i32_0 = arith.constant 0 : i32
    return %arg0, %c0_i32 : i32, i32
  }
  func.func @transform_11(%arg0: i32) -> (i32, i32) {
    %c0_i32 = arith.constant 0 : i32
    %c0_i32_0 = arith.constant 0 : i32
    return %arg0, %c0_i32 : i32, i32
  }
  func.func @transform_12(%arg0: i32) -> (i32, i32) {
    %c0_i32 = arith.constant 0 : i32
    %c0_i32_0 = arith.constant 0 : i32
    return %arg0, %c0_i32 : i32, i32
  }
}

</mosaic_0001>

<llo_original>
// kernel: tpu_custom_call.1
$region0: #{tpu_custom_call.1}
  #allocation0 [shape = 'u32[]', space=smem, size = 0x4, offset = 0x4, fixed_abs, tag = 'smem constant byte address 0x4 - core index']
  #allocation1 [shape = 'u32[144,128]{1,0:T(1,128)}', space=vmem, size = 0x12000, scoped, tag = 'internal scratch']
  %s0 = inlined_call_operand.hbm [shape: bf16[16,128], index: 0, kind: input, shape index: {}]
  %s1 = inlined_call_operand.hbm [shape: bf16[128,128], index: 1, kind: input, shape index: {}]
  %s2 = inlined_call_operand.vmem [shape: f32[1,128], index: 2, kind: input, shape index: {}]
  %s3 = inlined_call_operand.hbm [shape: bf16[128,128], index: 3, kind: input, shape index: {}]
  %s4 = inlined_call_operand.vmem [shape: f32[1,128], index: 4, kind: input, shape index: {}]
  %s5 = inlined_call_operand.hbm [shape: bf16[128,128], index: 5, kind: input, shape index: {}]
  %s6 = inlined_call_operand.hbm [shape: bf16[128,128], index: 6, kind: input, shape index: {}]
  %s7 = inlined_call_operand.vmem [shape: f32[1,128], index: 7, kind: input, shape index: {}]
  %s8 = inlined_call_operand.hbm [shape: bf16[128,128], index: 8, kind: input, shape index: {}]
  %s9 = inlined_call_operand.vmem [shape: f32[1,128], index: 9, kind: input, shape index: {}]
  %s10 = inlined_call_operand.vmem [shape: bf16[16,128], index: 10, kind: input, shape index: {}]
  %s11 = inlined_call_operand.hbm [shape: bf16[16,128], index: 11, kind: output, shape index: {0}]
  %s12 = inlined_call_operand.hbm [shape: f32[16,128], index: 12, kind: output, shape index: {1}]
  %13 = xla_tuple %s11, %s12
  %s14 = sld [smem:[#allocation0]]
  $region86: #{tpu_custom_call.1} parent=0
    _
  %s16 = ssub.s32 1, %s14
  %s17 = scalar_select 0, %s16, %s14
  $region1: #{tpu_custom_call.1} parent=0
    #allocation2 [shape = 'u8[4096]{0}', space=vmem, size = 0x1000, scoped, tag = 'input window, operand 0, single buffered']
    #allocation3 [shape = 's32[1]{0}', space=sflag, size = 0x4, scoped, tag = 'scoped memory for tpu_custom_call.1']
    #allocation4 [shape = 's32[1]{0}', space=sflag, size = 0x4, scoped, tag = 'scoped memory for tpu_custom_call.1']
    #allocation5 [shape = 'u8[32768]{0}', space=vmem, size = 0x8000, scoped, tag = 'input window, operand 1, single buffered']
    #allocation6 [shape = 's32[1]{0}', space=sflag, size = 0x4, scoped, tag = 'scoped memory for tpu_custom_call.1']
    #allocation7 [shape = 'u8[32768]{0}', space=vmem, size = 0x8000, scoped, tag = 'input window, operand 3, single buffered']
    #allocation8 [shape = 'u8[32768]{0}', space=vmem, size = 0x8000, scoped, tag = 'input window, operand 5, single buffered']
    #allocation9 [shape = 's32[1]{0}', space=sflag, size = 0x4, scoped, tag = 'scoped memory for tpu_custom_call.1']
    #allocation10 [shape = 'u8[32768]{0}', space=vmem, size = 0x8000, scoped, tag = 'input window, operand 6, single buffered']
    #allocation11 [shape = 'u8[32768]{0}', space=vmem, size = 0x8000, scoped, tag = 'input window, operand 8, single buffered']
    #allocation12 [shape = 's32[1]{0}', space=sflag, size = 0x4, scoped, tag = 'scoped memory for tpu_custom_call.1']
    #allocation13 [shape = 'u8[4096]{0}', space=vmem, size = 0x1000, scoped, tag = 'output window, operand 0, single buffered']
    #allocation14 [shape = 'u8[8192]{0}', space=vmem, size = 0x2000, scoped, tag = 'output window, operand 1, single buffered']
    #allocation15 [shape = 's32[1]{0}', space=sflag, size = 0x4, scoped, tag = 'scoped memory for tpu_custom_call.1']
    %18 = vsyncpa [#allocation3], 0
    %19 = vsyncpa [#allocation6], 0
    %20 = vsyncpa [#allocation9], 0
    %21 = vsyncpa [#allocation12], 0
    %22 = vsyncpa [#allocation4], 0
    %23 = vsyncpa [#allocation15], 0
    // Predicated region
    $region2: #{tpu_custom_call.1} parent=1 // pred_check
      _
    $region3: #{tpu_custom_call.1} parent=1 // pred_check_branch
      %25 = sbr.rel (0) target = $region5
    $region4: #{tpu_custom_call.1} parent=1 // pred_region
      %s27 = ssub.s32 128, 128
      %28 = vsyncadd [#allocation3], %s27
      %s29 = sshll.u32 [#allocation2], 4
      %s30 = int_to_ptr.vmem [resolvable:$true] %s29
      %35 = dma.hbm_to_vmem [thread:$0]  %s0, 128, %s30, [#allocation3], 64, 64, 4
    $region5: #{tpu_custom_call.1} parent=1 // pred_fallthru
      _
    // Predicated region
    $region6: #{tpu_custom_call.1} parent=1 // pred_check
      _
    $region7: #{tpu_custom_call.1} parent=1 // pred_check_branch
      %37 = sbr.rel (0) target = $region9
    $region8: #{tpu_custom_call.1} parent=1 // pred_region
      %s39 = ssub.s32 1024, 1024
      %40 = vsyncadd [#allocation6], %s39
      %s41 = sshll.u32 [#allocation5], 4
      %s42 = int_to_ptr.vmem [resolvable:$true] %s41
      %47 = dma.hbm_to_vmem [thread:$0]  %s1, 1024, %s42, [#allocation6], 64, 64, 4
    $region9: #{tpu_custom_call.1} parent=1 // pred_fallthru
      _
    // Predicated region
    $region10: #{tpu_custom_call.1} parent=1 // pred_check
      _
    $region11: #{tpu_custom_call.1} parent=1 // pred_check_branch
      %49 = sbr.rel (0) target = $region13
    $region12: #{tpu_custom_call.1} parent=1 // pred_region
      _
    $region13: #{tpu_custom_call.1} parent=1 // pred_fallthru
      _
    // Predicated region
    $region14: #{tpu_custom_call.1} parent=1 // pred_check
      _
    $region15: #{tpu_custom_call.1} parent=1 // pred_check_branch
      %51 = sbr.rel (0) target = $region17
    $region16: #{tpu_custom_call.1} parent=1 // pred_region
      %s53 = ssub.s32 1024, 1024
      %54 = vsyncadd [#allocation6], %s53
      %s55 = sshll.u32 [#allocation7], 4
      %s56 = int_to_ptr.vmem [resolvable:$true] %s55
      %61 = dma.hbm_to_vmem [thread:$0]  %s3, 1024, %s56, [#allocation6], 64, 64, 4
    $region17: #{tpu_custom_call.1} parent=1 // pred_fallthru
      _
    // Predicated region
    $region18: #{tpu_custom_call.1} parent=1 // pred_check
      _
    $region19: #{tpu_custom_call.1} parent=1 // pred_check_branch
      %63 = sbr.rel (0) target = $region21
    $region20: #{tpu_custom_call.1} parent=1 // pred_region
      _
    $region21: #{tpu_custom_call.1} parent=1 // pred_fallthru
      _
    // Predicated region
    $region22: #{tpu_custom_call.1} parent=1 // pred_check
      _
    $region23: #{tpu_custom_call.1} parent=1 // pred_check_branch
      %65 = sbr.rel (0) target = $region25
    $region24: #{tpu_custom_call.1} parent=1 // pred_region
      %s67 = ssub.s32 1024, 1024
      %68 = vsyncadd [#allocation9], %s67
      %s69 = sshll.u32 [#allocation8], 4
      %s70 = int_to_ptr.vmem [resolvable:$true] %s69
      %75 = dma.hbm_to_vmem [thread:$0]  %s5, 1024, %s70, [#allocation9], 64, 64, 4
    $region25: #{tpu_custom_call.1} parent=1 // pred_fallthru
      _
    // Predicated region
    $region26: #{tpu_custom_call.1} parent=1 // pred_check
      _
    $region27: #{tpu_custom_call.1} parent=1 // pred_check_branch
      %77 = sbr.rel (0) target = $region29
    $region28: #{tpu_custom_call.1} parent=1 // pred_region
      %s79 = ssub.s32 1024, 1024
      %80 = vsyncadd [#allocation9], %s79
      %s81 = sshll.u32 [#allocation10], 4
      %s82 = int_to_ptr.vmem [resolvable:$true] %s81
      %87 = dma.hbm_to_vmem [thread:$0]  %s6, 1024, %s82, [#allocation9], 64, 64, 4
    $region29: #{tpu_custom_call.1} parent=1 // pred_fallthru
      _
    // Predicated region
    $region30: #{tpu_custom_call.1} parent=1 // pred_check
      _
    $region31: #{tpu_custom_call.1} parent=1 // pred_check_branch
      %89 = sbr.rel (0) target = $region33
    $region32: #{tpu_custom_call.1} parent=1 // pred_region
      _
    $region33: #{tpu_custom_call.1} parent=1 // pred_fallthru
      _
    // Predicated region
    $region34: #{tpu_custom_call.1} parent=1 // pred_check
      _
    $region35: #{tpu_custom_call.1} parent=1 // pred_check_branch
      %91 = sbr.rel (0) target = $region37
    $region36: #{tpu_custom_call.1} parent=1 // pred_region
      %s93 = ssub.s32 1024, 1024
      %94 = vsyncadd [#allocation12], %s93
      %s95 = sshll.u32 [#allocation11], 4
      %s96 = int_to_ptr.vmem [resolvable:$true] %s95
      %101 = dma.hbm_to_vmem [thread:$0]  %s8, 1024, %s96, [#allocation12], 64, 64, 4
    $region37: #{tpu_custom_call.1} parent=1 // pred_fallthru
      _
    // Predicated region
    $region38: #{tpu_custom_call.1} parent=1 // pred_check
      _
    $region39: #{tpu_custom_call.1} parent=1 // pred_check_branch
      %103 = sbr.rel (0) target = $region41
    $region40: #{tpu_custom_call.1} parent=1 // pred_region
      _
    $region41: #{tpu_custom_call.1} parent=1 // pred_fallthru
      _
    // Predicated region
    $region42: #{tpu_custom_call.1} parent=1 // pred_check
      _
    $region43: #{tpu_custom_call.1} parent=1 // pred_check_branch
      %105 = sbr.rel (0) target = $region45
    $region44: #{tpu_custom_call.1} parent=1 // pred_region
      _
    $region45: #{tpu_custom_call.1} parent=1 // pred_fallthru
      _
    // Predicated region
    $region46: #{tpu_custom_call.1} parent=1 // pred_check
      _
    $region47: #{tpu_custom_call.1} parent=1 // pred_check_branch
      %107 = sbr.rel (0) target = $region49
    $region48: #{tpu_custom_call.1} parent=1 // pred_region
      %108 = dma.done [#allocation3], 128
    $region49: #{tpu_custom_call.1} parent=1 // pred_fallthru
      _
    // Predicated region
    $region50: #{tpu_custom_call.1} parent=1 // pred_check
      _
    $region51: #{tpu_custom_call.1} parent=1 // pred_check_branch
      %110 = sbr.rel (0) target = $region53
    $region52: #{tpu_custom_call.1} parent=1 // pred_region
      %111 = dma.done [#allocation6], 1024
    $region53: #{tpu_custom_call.1} parent=1 // pred_fallthru
      _
    // Predicated region
    $region54: #{tpu_custom_call.1} parent=1 // pred_check
      _
    $region55: #{tpu_custom_call.1} parent=1 // pred_check_branch
      %113 = sbr.rel (0) target = $region57
    $region56: #{tpu_custom_call.1} parent=1 // pred_region
      %114 = dma.done [#allocation6], 1024
    $region57: #{tpu_custom_call.1} parent=1 // pred_fallthru
      _
    // Predicated region
    $region58: #{tpu_custom_call.1} parent=1 // pred_check
      _
    $region59: #{tpu_custom_call.1} parent=1 // pred_check_branch
      %116 = sbr.rel (0) target = $region61
    $region60: #{tpu_custom_call.1} parent=1 // pred_region
      %117 = dma.done [#allocation9], 1024
    $region61: #{tpu_custom_call.1} parent=1 // pred_fallthru
      _
    // Predicated region
    $region62: #{tpu_custom_call.1} parent=1 // pred_check
      _
    $region63: #{tpu_custom_call.1} parent=1 // pred_check_branch
      %119 = sbr.rel (0) target = $region65
    $region64: #{tpu_custom_call.1} parent=1 // pred_region
      %120 = dma.done [#allocation9], 1024
    $region65: #{tpu_custom_call.1} parent=1 // pred_fallthru
      _
    // Predicated region
    $region66: #{tpu_custom_call.1} parent=1 // pred_check
      _
    $region67: #{tpu_custom_call.1} parent=1 // pred_check_branch
      %122 = sbr.rel (0) target = $region69
    $region68: #{tpu_custom_call.1} parent=1 // pred_region
      %123 = dma.done [#allocation12], 1024
    $region69: #{tpu_custom_call.1} parent=1 // pred_fallthru
      _
    %v125 = vld [vmem:[#allocation2] sm:$0xf]
    %v126 = vld [vmem:[#allocation2 + $0x4] sm:$0xf]
    %v127 = vld [vmem:[#allocation5] sm:$0xf]
    %v128 = vld [vmem:[#allocation5 + $0x4] sm:$0xf]
    %v129 = vld [vmem:[#allocation5 + $0x8] sm:$0xf]
    %v130 = vld [vmem:[#allocation5 + $0xc] sm:$0xf]
    %v131 = vld [vmem:[#allocation5 + $0x10] sm:$0xf]
    %v132 = vld [vmem:[#allocation5 + $0x14] sm:$0xf]
    %v133 = vld [vmem:[#allocation5 + $0x18] sm:$0xf]
    %v134 = vld [vmem:[#allocation5 + $0x1c] sm:$0xf]
    %v135 = vld [vmem:[#allocation5 + $0x20] sm:$0xf]
    %v136 = vld [vmem:[#allocation5 + $0x24] sm:$0xf]
    %v137 = vld [vmem:[#allocation5 + $0x28] sm:$0xf]
    %v138 = vld [vmem:[#allocation5 + $0x2c] sm:$0xf]
    %v139 = vld [vmem:[#allocation5 + $0x30] sm:$0xf]
    %v140 = vld [vmem:[#allocation5 + $0x34] sm:$0xf]
    %v141 = vld [vmem:[#allocation5 + $0x38] sm:$0xf]
    %v142 = vld [vmem:[#allocation5 + $0x3c] sm:$0xf]
    %v143 = vld [vmem:[%s2] sm:$0x1]
    %v145 = vlaneseq
    %v146 = vshrl.u32 %v145, 7
    %v147 = vsub.s32 0, %v146
    %v148 = vrot.slane %v143, %v147
    %v152 = vunpack.c.l.b16 %v125
    %v153 = vunpack.c.l.b16 %v126
    %v154 = vpack.c.b16 %v153, %v152
    %v172 = vunpack.c.l.b16 %v127
    %v173 = vunpack.c.l.b16 %v128
    %v174 = vunpack.c.l.b16 %v129
    %v175 = vunpack.c.l.b16 %v130
    %v176 = vunpack.c.l.b16 %v131
    %v177 = vunpack.c.l.b16 %v132
    %v178 = vunpack.c.l.b16 %v133
    %v179 = vunpack.c.l.b16 %v134
    %v180 = vunpack.c.l.b16 %v135
    %v181 = vunpack.c.l.b16 %v136
    %v182 = vunpack.c.l.b16 %v137
    %v183 = vunpack.c.l.b16 %v138
    %v184 = vunpack.c.l.b16 %v139
    %v185 = vunpack.c.l.b16 %v140
    %v186 = vunpack.c.l.b16 %v141
    %v187 = vunpack.c.l.b16 %v142
    %v188 = vpack.c.b16 %v173, %v172
    %v189 = vpack.c.b16 %v175, %v174
    %v190 = vpack.c.b16 %v177, %v176
    %v191 = vpack.c.b16 %v179, %v178
    %v192 = vpack.c.b16 %v181, %v180
    %v193 = vpack.c.b16 %v183, %v182
    %v194 = vpack.c.b16 %v185, %v184
    %v195 = vpack.c.b16 %v187, %v186
    %204 = vmatprep.subr.bf16.mxu0 0
    %205 = vmatpush1.bf16.msra.mxu0 %v188
    %206 = vmatprep.subr.bf16.mxu0 0
    %207 = vmatpush1.bf16.msra.mxu0 %v189
    %208 = vmatprep.subr.bf16.mxu0 0
    %209 = vmatpush1.bf16.msra.mxu0 %v190
    %210 = vmatprep.subr.bf16.mxu0 0
    %211 = vmatpush1.bf16.msra.mxu0 %v191
    %212 = vmatprep.subr.bf16.mxu0 0
    %213 = vmatpush1.bf16.msra.mxu0 %v192
    %214 = vmatprep.subr.bf16.mxu0 0
    %215 = vmatpush1.bf16.msra.mxu0 %v193
    %216 = vmatprep.subr.bf16.mxu0 0
    %217 = vmatpush1.bf16.msra.mxu0 %v194
    %218 = vmatprep.subr.bf16.mxu0 0
    %219 = vmatpush1.bf16.msra.mxu0 %v195
    %220 = vmatprep.subr.bf16.mxu0 0
    %221 = vmatpush1.bf16.msra.mxu0 0
    %222 = vmatprep.subr.bf16.mxu0 0
    %223 = vmatpush1.bf16.msra.mxu0 0
    %224 = vmatprep.subr.bf16.mxu0 0
    %225 = vmatpush1.bf16.msra.mxu0 0
    %226 = vmatprep.subr.bf16.mxu0 0
    %227 = vmatpush1.bf16.msra.mxu0 0
    %228 = vmatprep.subr.bf16.mxu0 0
    %229 = vmatpush1.bf16.msra.mxu0 0
    %230 = vmatprep.subr.bf16.mxu0 0
    %231 = vmatpush1.bf16.msra.mxu0 0
    %232 = vmatprep.subr.bf16.mxu0 0
    %233 = vmatpush1.bf16.msra.mxu0 0
    %234 = vmatprep.subr.bf16.mxu0 0
    %235 = vmatpush1.bf16.msra.mxu0 0
    %236 = vmatprep.mubr.bf16.mxu0 0
    %237 = vmatmul.mubr.bf16.gmra.mrb[0].mxu0 %v154
    %v238 = vpop.f32.mrb[0].mxu0
    %v239 = vadd.f32 %v148, %v238
    %v240 = vpop.f32.mrb[0].mxu0
    %v241 = vpop.f32.mrb[0].mxu0
    %v242 = vadd.f32 %v148, %v241
    %v243 = vpop.f32.mrb[0].mxu0
    %244 = vdwg.mxu0
    %v245 = vpack.c.bf16 %v242, %v239
    %v246 = vmax.bf16 %v245, 0
    %v247 = vld [vmem:[#allocation7] sm:$0xf]
    %v248 = vld [vmem:[#allocation7 + $0x4] sm:$0xf]
    %v249 = vld [vmem:[#allocation7 + $0x8] sm:$0xf]
    %v250 = vld [vmem:[#allocation7 + $0xc] sm:$0xf]
    %v251 = vld [vmem:[#allocation7 + $0x10] sm:$0xf]
    %v252 = vld [vmem:[#allocation7 + $0x14] sm:$0xf]
    %v253 = vld [vmem:[#allocation7 + $0x18] sm:$0xf]
    %v254 = vld [vmem:[#allocation7 + $0x1c] sm:$0xf]
    %v255 = vld [vmem:[#allocation7 + $0x20] sm:$0xf]
    %v256 = vld [vmem:[#allocation7 + $0x24] sm:$0xf]
    %v257 = vld [vmem:[#allocation7 + $0x28] sm:$0xf]
    %v258 = vld [vmem:[#allocation7 + $0x2c] sm:$0xf]
    %v259 = vld [vmem:[#allocation7 + $0x30] sm:$0xf]
    %v260 = vld [vmem:[#allocation7 + $0x34] sm:$0xf]
    %v261 = vld [vmem:[#allocation7 + $0x38] sm:$0xf]
    %v262 = vld [vmem:[#allocation7 + $0x3c] sm:$0xf]
    %v263 = vld [vmem:[%s4] sm:$0x1]
    %v265 = vlaneseq
    %v266 = vshrl.u32 %v265, 7
    %v267 = vsub.s32 0, %v266
    %v268 = vrot.slane %v263, %v267
    %v286 = vunpack.c.l.b16 %v247
    %v287 = vunpack.c.l.b16 %v248
    %v288 = vunpack.c.l.b16 %v249
    %v289 = vunpack.c.l.b16 %v250
    %v290 = vunpack.c.l.b16 %v251
    %v291 = vunpack.c.l.b16 %v252
    %v292 = vunpack.c.l.b16 %v253
    %v293 = vunpack.c.l.b16 %v254
    %v294 = vunpack.c.l.b16 %v255
    %v295 = vunpack.c.l.b16 %v256
    %v296 = vunpack.c.l.b16 %v257
    %v297 = vunpack.c.l.b16 %v258
    %v298 = vunpack.c.l.b16 %v259
    %v299 = vunpack.c.l.b16 %v260
    %v300 = vunpack.c.l.b16 %v261
    %v301 = vunpack.c.l.b16 %v262
    %v302 = vpack.c.b16 %v287, %v286
    %v303 = vpack.c.b16 %v289, %v288
    %v304 = vpack.c.b16 %v291, %v290
    %v305 = vpack.c.b16 %v293, %v292
    %v306 = vpack.c.b16 %v295, %v294
    %v307 = vpack.c.b16 %v297, %v296
    %v308 = vpack.c.b16 %v299, %v298
    %v309 = vpack.c.b16 %v301, %v300
    %318 = vmatprep.subr.bf16.mxu0 0
    %319 = vmatpush1.bf16.msra.mxu0 %v302
    %320 = vmatprep.subr.bf16.mxu0 0
    %321 = vmatpush1.bf16.msra.mxu0 %v303
    %322 = vmatprep.subr.bf16.mxu0 0
    %323 = vmatpush1.bf16.msra.mxu0 %v304
    %324 = vmatprep.subr.bf16.mxu0 0
    %325 = vmatpush1.bf16.msra.mxu0 %v305
    %326 = vmatprep.subr.bf16.mxu0 0
    %327 = vmatpush1.bf16.msra.mxu0 %v306
    %328 = vmatprep.subr.bf16.mxu0 0
    %329 = vmatpush1.bf16.msra.mxu0 %v307
    %330 = vmatprep.subr.bf16.mxu0 0
    %331 = vmatpush1.bf16.msra.mxu0 %v308
    %332 = vmatprep.subr.bf16.mxu0 0
    %333 = vmatpush1.bf16.msra.mxu0 %v309
    %334 = vmatprep.subr.bf16.mxu0 0
    %335 = vmatpush1.bf16.msra.mxu0 0
    %336 = vmatprep.subr.bf16.mxu0 0
    %337 = vmatpush1.bf16.msra.mxu0 0
    %338 = vmatprep.subr.bf16.mxu0 0
    %339 = vmatpush1.bf16.msra.mxu0 0
    %340 = vmatprep.subr.bf16.mxu0 0
    %341 = vmatpush1.bf16.msra.mxu0 0
    %342 = vmatprep.subr.bf16.mxu0 0
    %343 = vmatpush1.bf16.msra.mxu0 0
    %344 = vmatprep.subr.bf16.mxu0 0
    %345 = vmatpush1.bf16.msra.mxu0 0
    %346 = vmatprep.subr.bf16.mxu0 0
    %347 = vmatpush1.bf16.msra.mxu0 0
    %348 = vmatprep.subr.bf16.mxu0 0
    %349 = vmatpush1.bf16.msra.mxu0 0
    %350 = vmatprep.mubr.bf16.mxu0 0
    %351 = vmatmul.mubr.bf16.gmra.mrb[0].mxu0 %v246
    %v352 = vpop.f32.mrb[0].mxu0
    %v353 = vadd.f32 %v268, %v352
    %v354 = vpop.f32.mrb[0].mxu0
    %v355 = vpop.f32.mrb[0].mxu0
    %v356 = vadd.f32 %v268, %v355
    %v357 = vpop.f32.mrb[0].mxu0
    %358 = vdwg.mxu0
    %v359 = vld [vmem:[%s10] sm:$0xf]
    %v360 = vld [vmem:[%s10 + $0x4] sm:$0xf]
    %v361 = vunpack.c.l.bf16 %v359
    %v362 = vunpack.c.l.bf16 %v360
    %v363 = vmul.f32 %v353, 0.5
    %v364 = vmul.f32 %v356, 0.5
    %v365 = vmul.f32 %v363, 1.442695
    %v366 = vpow.pop %v365
    %v367 = vmul.f32 %v364, 1.442695
    %v368 = vpow.pop %v367
    %v369 = vmul.f32 %v361, %v366
    %v370 = vmul.f32 %v362, %v368
    %v371 = vpack.c.bf16 %v356, %v353
    %v372 = vld [vmem:[#allocation8] sm:$0xf]
    %v373 = vld [vmem:[#allocation8 + $0x4] sm:$0xf]
    %v374 = vld [vmem:[#allocation8 + $0x8] sm:$0xf]
    %v375 = vld [vmem:[#allocation8 + $0xc] sm:$0xf]
    %v376 = vld [vmem:[#allocation8 + $0x10] sm:$0xf]
    %v377 = vld [vmem:[#allocation8 + $0x14] sm:$0xf]
    %v378 = vld [vmem:[#allocation8 + $0x18] sm:$0xf]
    %v379 = vld [vmem:[#allocation8 + $0x1c] sm:$0xf]
    %v380 = vld [vmem:[#allocation8 + $0x20] sm:$0xf]
    %v381 = vld [vmem:[#allocation8 + $0x24] sm:$0xf]
    %v382 = vld [vmem:[#allocation8 + $0x28] sm:$0xf]
    %v383 = vld [vmem:[#allocation8 + $0x2c] sm:$0xf]
    %v384 = vld [vmem:[#allocation8 + $0x30] sm:$0xf]
    %v385 = vld [vmem:[#allocation8 + $0x34] sm:$0xf]
    %v386 = vld [vmem:[#allocation8 + $0x38] sm:$0xf]
    %v387 = vld [vmem:[#allocation8 + $0x3c] sm:$0xf]
    %v388 = vpack.c.bf16 %v370, %v369
    %v389 = vld [vmem:[#allocation10] sm:$0xf]
    %v390 = vld [vmem:[#allocation10 + $0x4] sm:$0xf]
    %v391 = vld [vmem:[#allocation10 + $0x8] sm:$0xf]
    %v392 = vld [vmem:[#allocation10 + $0xc] sm:$0xf]
    %v393 = vld [vmem:[#allocation10 + $0x10] sm:$0xf]
    %v394 = vld [vmem:[#allocation10 + $0x14] sm:$0xf]
    %v395 = vld [vmem:[#allocation10 + $0x18] sm:$0xf]
    %v396 = vld [vmem:[#allocation10 + $0x1c] sm:$0xf]
    %v397 = vld [vmem:[#allocation10 + $0x20] sm:$0xf]
    %v398 = vld [vmem:[#allocation10 + $0x24] sm:$0xf]
    %v399 = vld [vmem:[#allocation10 + $0x28] sm:$0xf]
    %v400 = vld [vmem:[#allocation10 + $0x2c] sm:$0xf]
    %v401 = vld [vmem:[#allocation10 + $0x30] sm:$0xf]
    %v402 = vld [vmem:[#allocation10 + $0x34] sm:$0xf]
    %v403 = vld [vmem:[#allocation10 + $0x38] sm:$0xf]
    %v404 = vld [vmem:[#allocation10 + $0x3c] sm:$0xf]
    %v421 = vunpack.c.l.b16 %v389
    %v422 = vunpack.c.l.b16 %v390
    %v423 = vunpack.c.l.b16 %v391
    %v424 = vunpack.c.l.b16 %v392
    %v425 = vunpack.c.l.b16 %v393
    %v426 = vunpack.c.l.b16 %v394
    %v427 = vunpack.c.l.b16 %v395
    %v428 = vunpack.c.l.b16 %v396
    %v429 = vunpack.c.l.b16 %v397
    %v430 = vunpack.c.l.b16 %v398
    %v431 = vunpack.c.l.b16 %v399
    %v432 = vunpack.c.l.b16 %v400
    %v433 = vunpack.c.l.b16 %v401
    %v434 = vunpack.c.l.b16 %v402
    %v435 = vunpack.c.l.b16 %v403
    %v436 = vunpack.c.l.b16 %v404
    %v437 = vpack.c.b16 %v422, %v421
    %v438 = vpack.c.b16 %v424, %v423
    %v439 = vpack.c.b16 %v426, %v425
    %v440 = vpack.c.b16 %v428, %v427
    %v441 = vpack.c.b16 %v430, %v429
    %v442 = vpack.c.b16 %v432, %v431
    %v443 = vpack.c.b16 %v434, %v433
    %v444 = vpack.c.b16 %v436, %v435
    %453 = vmatprep.subr.bf16.mxu0 0
    %454 = vmatpush1.bf16.msra.mxu0 %v437
    %455 = vmatprep.subr.bf16.mxu0 0
    %456 = vmatpush1.bf16.msra.mxu0 %v438
    %457 = vmatprep.subr.bf16.mxu0 0
    %458 = vmatpush1.bf16.msra.mxu0 %v439
    %459 = vmatprep.subr.bf16.mxu0 0
    %460 = vmatpush1.bf16.msra.mxu0 %v440
    %461 = vmatprep.subr.bf16.mxu0 0
    %462 = vmatpush1.bf16.msra.mxu0 %v441
    %463 = vmatprep.subr.bf16.mxu0 0
    %464 = vmatpush1.bf16.msra.mxu0 %v442
    %465 = vmatprep.subr.bf16.mxu0 0
    %466 = vmatpush1.bf16.msra.mxu0 %v443
    %467 = vmatprep.subr.bf16.mxu0 0
    %468 = vmatpush1.bf16.msra.mxu0 %v444
    %469 = vmatprep.subr.bf16.mxu0 0
    %470 = vmatpush1.bf16.msra.mxu0 0
    %471 = vmatprep.subr.bf16.mxu0 0
    %472 = vmatpush1.bf16.msra.mxu0 0
    %473 = vmatprep.subr.bf16.mxu0 0
    %474 = vmatpush1.bf16.msra.mxu0 0
    %475 = vmatprep.subr.bf16.mxu0 0
    %476 = vmatpush1.bf16.msra.mxu0 0
    %477 = vmatprep.subr.bf16.mxu0 0
    %478 = vmatpush1.bf16.msra.mxu0 0
    %479 = vmatprep.subr.bf16.mxu0 0
    %480 = vmatpush1.bf16.msra.mxu0 0
    %481 = vmatprep.subr.bf16.mxu0 0
    %482 = vmatpush1.bf16.msra.mxu0 0
    %483 = vmatprep.subr.bf16.mxu0 0
    %484 = vmatpush1.bf16.msra.mxu0 0
    %485 = vmatprep.mubr.bf16.mxu0 0
    %486 = vmatmul.mubr.bf16.gmra.mrb[0].mxu0 %v388
    %v487 = vpop.f32.mrb[0].mxu0
    %v488 = vadd.f32 0.0, %v487
    %v489 = vpop.f32.mrb[0].mxu0
    %v490 = vpop.f32.mrb[0].mxu0
    %v491 = vadd.f32 0.0, %v490
    %v492 = vpop.f32.mrb[0].mxu0
    %493 = vdwg.mxu0
    %v510 = vunpack.c.l.b16 %v372
    %v511 = vunpack.c.l.b16 %v373
    %v512 = vunpack.c.l.b16 %v374
    %v513 = vunpack.c.l.b16 %v375
    %v514 = vunpack.c.l.b16 %v376
    %v515 = vunpack.c.l.b16 %v377
    %v516 = vunpack.c.l.b16 %v378
    %v517 = vunpack.c.l.b16 %v379
    %v518 = vunpack.c.l.b16 %v380
    %v519 = vunpack.c.l.b16 %v381
    %v520 = vunpack.c.l.b16 %v382
    %v521 = vunpack.c.l.b16 %v383
    %v522 = vunpack.c.l.b16 %v384
    %v523 = vunpack.c.l.b16 %v385
    %v524 = vunpack.c.l.b16 %v386
    %v525 = vunpack.c.l.b16 %v387
    %v526 = vpack.c.b16 %v511, %v510
    %v527 = vpack.c.b16 %v513, %v512
    %v528 = vpack.c.b16 %v515, %v514
    %v529 = vpack.c.b16 %v517, %v516
    %v530 = vpack.c.b16 %v519, %v518
    %v531 = vpack.c.b16 %v521, %v520
    %v532 = vpack.c.b16 %v523, %v522
    %v533 = vpack.c.b16 %v525, %v524
    %542 = vmatprep.subr.bf16.mxu0 0
    %543 = vmatpush1.bf16.msra.mxu0 %v526
    %544 = vmatprep.subr.bf16.mxu0 0
    %545 = vmatpush1.bf16.msra.mxu0 %v527
    %546 = vmatprep.subr.bf16.mxu0 0
    %547 = vmatpush1.bf16.msra.mxu0 %v528
    %548 = vmatprep.subr.bf16.mxu0 0
    %549 = vmatpush1.bf16.msra.mxu0 %v529
    %550 = vmatprep.subr.bf16.mxu0 0
    %551 = vmatpush1.bf16.msra.mxu0 %v530
    %552 = vmatprep.subr.bf16.mxu0 0
    %553 = vmatpush1.bf16.msra.mxu0 %v531
    %554 = vmatprep.subr.bf16.mxu0 0
    %555 = vmatpush1.bf16.msra.mxu0 %v532
    %556 = vmatprep.subr.bf16.mxu0 0
    %557 = vmatpush1.bf16.msra.mxu0 %v533
    %558 = vmatprep.subr.bf16.mxu0 0
    %559 = vmatpush1.bf16.msra.mxu0 0
    %560 = vmatprep.subr.bf16.mxu0 0
    %561 = vmatpush1.bf16.msra.mxu0 0
    %562 = vmatprep.subr.bf16.mxu0 0
    %563 = vmatpush1.bf16.msra.mxu0 0
    %564 = vmatprep.subr.bf16.mxu0 0
    %565 = vmatpush1.bf16.msra.mxu0 0
    %566 = vmatprep.subr.bf16.mxu0 0
    %567 = vmatpush1.bf16.msra.mxu0 0
    %568 = vmatprep.subr.bf16.mxu0 0
    %569 = vmatpush1.bf16.msra.mxu0 0
    %570 = vmatprep.subr.bf16.mxu0 0
    %571 = vmatpush1.bf16.msra.mxu0 0
    %572 = vmatprep.subr.bf16.mxu0 0
    %573 = vmatpush1.bf16.msra.mxu0 0
    %574 = vmatprep.mubr.bf16.mxu0 0
    %575 = vmatmul.mubr.bf16.gmra.mrb[0].mxu0 %v371
    %v576 = vpop.f32.mrb[0].mxu0
    %v577 = vadd.f32 %v488, %v576
    %v578 = vpop.f32.mrb[0].mxu0
    %v579 = vpop.f32.mrb[0].mxu0
    %v580 = vadd.f32 %v491, %v579
    %v581 = vpop.f32.mrb[0].mxu0
    %582 = vdwg.mxu0
    %v583 = vld [vmem:[%s7] sm:$0x1]
    %v585 = vlaneseq
    %v586 = vshrl.u32 %v585, 7
    %v587 = vsub.s32 0, %v586
    %v588 = vrot.slane %v583, %v587
    %v590 = vadd.f32 %v577, %v588
    %v591 = vadd.f32 %v580, %v588
    %v592 = vpack.c.bf16 %v591, %v590
    %v593 = vmax.bf16 %v592, 0
    %v594 = vld [vmem:[#allocation11] sm:$0xf]
    %v595 = vld [vmem:[#allocation11 + $0x4] sm:$0xf]
    %v596 = vld [vmem:[#allocation11 + $0x8] sm:$0xf]
    %v597 = vld [vmem:[#allocation11 + $0xc] sm:$0xf]
    %v598 = vld [vmem:[#allocation11 + $0x10] sm:$0xf]
    %v599 = vld [vmem:[#allocation11 + $0x14] sm:$0xf]
    %v600 = vld [vmem:[#allocation11 + $0x18] sm:$0xf]
    %v601 = vld [vmem:[#allocation11 + $0x1c] sm:$0xf]
    %v602 = vld [vmem:[#allocation11 + $0x20] sm:$0xf]
    %v603 = vld [vmem:[#allocation11 + $0x24] sm:$0xf]
    %v604 = vld [vmem:[#allocation11 + $0x28] sm:$0xf]
    %v605 = vld [vmem:[#allocation11 + $0x2c] sm:$0xf]
    %v606 = vld [vmem:[#allocation11 + $0x30] sm:$0xf]
    %v607 = vld [vmem:[#allocation11 + $0x34] sm:$0xf]
    %v608 = vld [vmem:[#allocation11 + $0x38] sm:$0xf]
    %v609 = vld [vmem:[#allocation11 + $0x3c] sm:$0xf]
    %v610 = vld [vmem:[%s9] sm:$0x1]
    %v612 = vlaneseq
    %v613 = vshrl.u32 %v612, 7
    %v614 = vsub.s32 0, %v613
    %v615 = vrot.slane %v610, %v614
    %v633 = vunpack.c.l.b16 %v594
    %v634 = vunpack.c.l.b16 %v595
    %v635 = vunpack.c.l.b16 %v596
    %v636 = vunpack.c.l.b16 %v597
    %v637 = vunpack.c.l.b16 %v598
    %v638 = vunpack.c.l.b16 %v599
    %v639 = vunpack.c.l.b16 %v600
    %v640 = vunpack.c.l.b16 %v601
    %v641 = vunpack.c.l.b16 %v602
    %v642 = vunpack.c.l.b16 %v603
    %v643 = vunpack.c.l.b16 %v604
    %v644 = vunpack.c.l.b16 %v605
    %v645 = vunpack.c.l.b16 %v606
    %v646 = vunpack.c.l.b16 %v607
    %v647 = vunpack.c.l.b16 %v608
    %v648 = vunpack.c.l.b16 %v609
    %v649 = vpack.c.b16 %v634, %v633
    %v650 = vpack.c.b16 %v636, %v635
    %v651 = vpack.c.b16 %v638, %v637
    %v652 = vpack.c.b16 %v640, %v639
    %v653 = vpack.c.b16 %v642, %v641
    %v654 = vpack.c.b16 %v644, %v643
    %v655 = vpack.c.b16 %v646, %v645
    %v656 = vpack.c.b16 %v648, %v647
    %665 = vmatprep.subr.bf16.mxu0 0
    %666 = vmatpush1.bf16.msra.mxu0 %v649
    %667 = vmatprep.subr.bf16.mxu0 0
    %668 = vmatpush1.bf16.msra.mxu0 %v650
    %669 = vmatprep.subr.bf16.mxu0 0
    %670 = vmatpush1.bf16.msra.mxu0 %v651
    %671 = vmatprep.subr.bf16.mxu0 0
    %672 = vmatpush1.bf16.msra.mxu0 %v652
    %673 = vmatprep.subr.bf16.mxu0 0
    %674 = vmatpush1.bf16.msra.mxu0 %v653
    %675 = vmatprep.subr.bf16.mxu0 0
    %676 = vmatpush1.bf16.msra.mxu0 %v654
    %677 = vmatprep.subr.bf16.mxu0 0
    %678 = vmatpush1.bf16.msra.mxu0 %v655
    %679 = vmatprep.subr.bf16.mxu0 0
    %680 = vmatpush1.bf16.msra.mxu0 %v656
    %681 = vmatprep.subr.bf16.mxu0 0
    %682 = vmatpush1.bf16.msra.mxu0 0
    %683 = vmatprep.subr.bf16.mxu0 0
    %684 = vmatpush1.bf16.msra.mxu0 0
    %685 = vmatprep.subr.bf16.mxu0 0
    %686 = vmatpush1.bf16.msra.mxu0 0
    %687 = vmatprep.subr.bf16.mxu0 0
    %688 = vmatpush1.bf16.msra.mxu0 0
    %689 = vmatprep.subr.bf16.mxu0 0
    %690 = vmatpush1.bf16.msra.mxu0 0
    %691 = vmatprep.subr.bf16.mxu0 0
    %692 = vmatpush1.bf16.msra.mxu0 0
    %693 = vmatprep.subr.bf16.mxu0 0
    %694 = vmatpush1.bf16.msra.mxu0 0
    %695 = vmatprep.subr.bf16.mxu0 0
    %696 = vmatpush1.bf16.msra.mxu0 0
    %697 = vmatprep.mubr.bf16.mxu0 0
    %698 = vmatmul.mubr.bf16.gmra.mrb[0].mxu0 %v593
    %v699 = vpop.f32.mrb[0].mxu0
    %v700 = vadd.f32 %v615, %v699
    %v701 = vpop.f32.mrb[0].mxu0
    %v702 = vpop.f32.mrb[0].mxu0
    %v703 = vadd.f32 %v615, %v702
    %v704 = vpop.f32.mrb[0].mxu0
    %705 = vdwg.mxu0
    %v706 = vpack.c.bf16 %v703, %v700
    %v708 = vunpack.c.l.b16 %v706
    %v709 = vunpack.c.h.b16 %v706
    %v710 = vpack.c.b16 %v708, %v708
    %v711 = vpack.c.b16 %v709, %v709
    %714 = vst [vmem:[#allocation13] sm:$0xf] %v710
    %715 = vst [vmem:[#allocation13 + $0x4] sm:$0xf] %v711
    %716 = vst [vmem:[#allocation14] sm:$0xff] %v353
    %717 = vst [vmem:[#allocation14 + $0x8] sm:$0xff] %v356
    // Predicated region
    $region70: #{tpu_custom_call.1} parent=1 // pred_check
      _
    $region71: #{tpu_custom_call.1} parent=1 // pred_check_branch
      %719 = sbr.rel (0) target = $region73
    $region72: #{tpu_custom_call.1} parent=1 // pred_region
      %s721 = ssub.s32 128, 128
      %722 = vsyncadd [#allocation4], %s721
      %s723 = sshll.u32 [#allocation13], 4
      %s724 = int_to_ptr.vmem [resolvable:$true] %s723
      %729 = dma.vmem_to_hbm [thread:$0]  %s724, 128, %s11, [#allocation4], 64, 64, 4
    $region73: #{tpu_custom_call.1} parent=1 // pred_fallthru
      _
    // Predicated region
    $region74: #{tpu_custom_call.1} parent=1 // pred_check
      _
    $region75: #{tpu_custom_call.1} parent=1 // pred_check_branch
      %731 = sbr.rel (0) target = $region77
    $region76: #{tpu_custom_call.1} parent=1 // pred_region
      %s733 = ssub.s32 256, 256
      %734 = vsyncadd [#allocation15], %s733
      %s735 = sshll.u32 [#allocation14], 4
      %s736 = int_to_ptr.vmem [resolvable:$true] %s735
      %741 = dma.vmem_to_hbm [thread:$0]  %s736, 256, %s12, [#allocation15], 128, 128, 8
    $region77: #{tpu_custom_call.1} parent=1 // pred_fallthru
      _
    // Predicated region
    $region78: #{tpu_custom_call.1} parent=1 // pred_check
      _
    $region79: #{tpu_custom_call.1} parent=1 // pred_check_branch
      %743 = sbr.rel (0) target = $region81
    $region80: #{tpu_custom_call.1} parent=1 // pred_region
      %744 = dma.done [#allocation4], 128
    $region81: #{tpu_custom_call.1} parent=1 // pred_fallthru
      _
    // Predicated region
    $region82: #{tpu_custom_call.1} parent=1 // pred_check
      _
    $region83: #{tpu_custom_call.1} parent=1 // pred_check_branch
      %746 = sbr.rel (0) target = $region85
    $region84: #{tpu_custom_call.1} parent=1 // pred_region
      %747 = dma.done [#allocation15], 256
    $region85: #{tpu_custom_call.1} parent=1 // pred_fallthru
      _
    %748 = vsyncpa [#allocation3], 1
    %749 = vsyncpa [#allocation6], 1
    %750 = vsyncpa [#allocation9], 1
    %751 = vsyncpa [#allocation12], 1
    %752 = vsyncpa [#allocation4], 1
    %753 = vsyncpa [#allocation15], 1

</llo_original>
